<compile_context>
chip_gen: v7x
topology: tpu7x:2x2x1
jax: 0.10.0
libtpu: 0.0.40
codegen_flags: <defaults>
</compile_context>

<pallas_src>
import jax
import jax.numpy as jnp
from jax import lax
from jax.experimental import pallas as pl
from jax.experimental.pallas import tpu as pltpu

_COLS = 128  # lane width; 1-D inputs are viewed as (rows, 128)


def _softplus_f32(p, q):
    # softplus(q - p) == -log(exp(p) / (exp(p) + exp(q))), numerically stable.
    d = q - p
    return jnp.maximum(d, 0.0) + jnp.log1p(jnp.exp(-jnp.abs(d)))


def _reference_loss(positives, negatives):
    p = positives.astype(jnp.float32)
    q = negatives.astype(jnp.float32)
    return jnp.mean(_softplus_f32(p, q))


def _default_num_parts():
    # Two TensorCores per chip only on v7x; on v5e/v6e the extra grid axis
    # would just fragment the accumulator for no gain.
    try:
        kind = jax.devices()[0].device_kind.lower()
    except Exception:
        return 1
    return 2 if "v7" in kind else 1


def _build_kernel(n_valid, tile_rows, tiles_per_part, full_tiles):
    strips = tile_rows // 8
    unroll = min(8, strips)

    def kernel(pos_ref, neg_ref, out_ref):
        # pos_ref / neg_ref : (tile_rows, 128) input tile (original dtype)
        # out_ref           : (8, 128) f32 accumulator for this part, resident
        #                     across the 'arbitrary' reduction axis.
        part = pl.program_id(0)
        step = pl.program_id(1)

        @pl.when(step == 0)
        def _init():
            out_ref[...] = jnp.zeros_like(out_ref)

        # Logical tile index.  Phantom tiles (uneven num_parts split) have
        # their DMA index clamped in the index_map; here they take the masked
        # path and contribute exactly zero.
        t_lin = part * tiles_per_part + step
        tile_row0 = t_lin * tile_rows

        def strip_softplus(off):
            p = pos_ref[pl.ds(off, 8), :].astype(jnp.float32)
            q = neg_ref[pl.ds(off, 8), :].astype(jnp.float32)
            return _softplus_f32(p, q)

        def full_body(r, acc):
            off = pl.multiple_of(r * 8, 8)
            return acc + strip_softplus(off)

        def masked_body(r, acc):
            off = pl.multiple_of(r * 8, 8)
            vals = strip_softplus(off)
            row = lax.broadcasted_iota(jnp.int32, (8, _COLS), 0)
            lane = lax.broadcasted_iota(jnp.int32, (8, _COLS), 1)
            flat = (tile_row0 + off + row) * _COLS + lane
            # Masks both the zero-padded tail and garbage rows of a clipped
            # (out-of-bounds) final block; select drops any NaN/inf garbage.
            return acc + jnp.where(flat < n_valid, vals, 0.0)

        zero = jnp.zeros((8, _COLS), jnp.float32)
        is_full = t_lin < full_tiles  # every element of this tile is valid

        @pl.when(is_full)
        def _full_tile():
            out_ref[...] += lax.fori_loop(0, strips, full_body, zero,
                                          unroll=unroll)

        @pl.when(jnp.logical_not(is_full))
        def _ragged_tile():
            out_ref[...] += lax.fori_loop(0, strips, masked_body, zero,
                                          unroll=unroll)

    return kernel


def hardway_loss(positives, negatives, *, tile_rows=4096, num_parts=None,
                 min_kernel_elems=4096, use_kernel=None):
    """loss = -(1/N) * sum_i log(exp(p_i) / (exp(p_i) + exp(n_i)))."""
    assert positives.shape == negatives.shape
    assert positives.ndim == 1
    n = positives.shape[0]
    assert n > 0

    if use_kernel is None:
        use_kernel = n >= min_kernel_elems
    if not use_kernel:
        # Launch + tiling overhead dominates for tiny inputs.
        return _reference_loss(positives, negatives)

    # ---- lane-dense (rows, 128) view of the 1-D inputs ---------------------
    if n % _COLS == 0 and n // _COLS >= 8:
        rows = n // _COLS                       # free reshape, no copy, no pad
        pos2d = positives.reshape(rows, _COLS)
        neg2d = negatives.reshape(rows, _COLS)
    else:
        # Ragged N: one minimal pad-to-1024 copy.  Pad values are ignored (the
        # kernel masks on the true N), so plain zeros are safe for any dtype.
        # TODO(synk): fully zero-copy ragged handling would need manual 1-D
        # HBM DMA (rank-1 VMEM tiles waste 8x sublanes), not worth it here.
        padded = 8 * _COLS * pl.cdiv(n, 8 * _COLS)
        rows = padded // _COLS
        pos2d = jnp.pad(positives, (0, padded - n)).reshape(rows, _COLS)
        neg2d = jnp.pad(negatives, (0, padded - n)).reshape(rows, _COLS)

    # ---- tiling -------------------------------------------------------------
    tile_rows = max(8, min(int(tile_rows), (rows // 8) * 8))
    tile_rows -= tile_rows % 8                  # strip loop needs %8 == 0
    total_tiles = pl.cdiv(rows, tile_rows)
    full_tiles = n // (tile_rows * _COLS)       # tiles with no invalid element

    if num_parts is None:
        num_parts = _default_num_parts()
    num_parts = max(1, min(int(num_parts), total_tiles))
    tiles_per_part = pl.cdiv(total_tiles, num_parts)
    last_tile = total_tiles - 1

    def in_index_map(c, i):
        # Clamp phantom tiles of an uneven split onto the last real tile; the
        # kernel masks their contribution to exactly zero.
        return (jnp.minimum(c * tiles_per_part + i, last_tile), 0)

    tile_bytes = tile_rows * _COLS * pos2d.dtype.itemsize
    vmem_limit = int(min(max(4 * tile_bytes + (4 << 20), 16 << 20), 48 << 20))

    partials = pl.pallas_call(
        _build_kernel(n, tile_rows, tiles_per_part, full_tiles),
        out_shape=jax.ShapeDtypeStruct((num_parts * 8, _COLS), jnp.float32),
        grid_spec=pltpu.PrefetchScalarGridSpec(
            num_scalar_prefetch=0,
            grid=(num_parts, tiles_per_part),
            in_specs=[
                pl.BlockSpec((tile_rows, _COLS), in_index_map),
                pl.BlockSpec((tile_rows, _COLS), in_index_map),
            ],
            out_specs=pl.BlockSpec((8, _COLS), lambda c, i: (c, 0)),
        ),
        compiler_params=pltpu.CompilerParams(
            dimension_semantics=("parallel", "arbitrary"),
            vmem_limit_bytes=vmem_limit),
    )(pos2d, neg2d)

    # Tiny finalize: sum the (num_parts*8, 128) partials, multiply by 1/N.
    return jnp.sum(partials) * (1.0 / n)


if __name__ == "__main__":
    key = jax.random.PRNGKey(0)

    def ref_loss(p, q):
        # Written exactly like the torch module.
        return -jnp.mean(jnp.log(jnp.exp(p) / (jnp.exp(p) + jnp.exp(q))))

    def check(n, **kw):
        kp, kq = jax.random.split(jax.random.fold_in(key, n))
        p = jax.random.normal(kp, (n,), dtype=jnp.float32)
        q = jax.random.normal(kq, (n,), dtype=jnp.float32)
        got = jax.block_until_ready(hardway_loss(p, q, **kw))
        want = ref_loss(p, q)
        assert jnp.allclose(got, want, rtol=1e-4, atol=1e-5), (n, kw, got, want)

    # Tiny input, mirrors the torch usage (a small batch of pair scores).
    check(8)                                              # pure-JAX fallback
    check(8, use_kernel=True)                             # kernel, full masking
    check(2048, use_kernel=True)                          # zero-copy, full tile
    check(50000, use_kernel=True, tile_rows=64)           # multi-tile + ragged
    check(50000, use_kernel=True, tile_rows=64, num_parts=2)  # v7x-style split

    print("KERNEL_OK")
</pallas_src>

<mosaic_0001>
module attributes {stable_mosaic.version = 11 : i64} {
  func.func @kernel(%arg0: i32, %arg1: i32, %arg2: memref<8x128xf32, #tpu.memory_space<vmem>>, %arg3: memref<8x128xf32, #tpu.memory_space<vmem>>, %arg4: memref<8x128xf32, #tpu.memory_space<vmem>>) attributes {dimension_semantics = [#tpu.dimension_semantics<parallel>, #tpu.dimension_semantics<arbitrary>], iteration_bounds = array<i64: 1, 1>, scalar_prefetch = 0 : i64, scratch_operands = 0 : i64, tpu.core_type = #tpu.core_type<tc>, window_params = [{transform_indices = @transform_0, window_bounds = array<i64: 8, 128>}, {transform_indices = @transform_1, window_bounds = array<i64: 8, 128>}, {transform_indices = @transform_2, window_bounds = array<i64: 8, 128>}]} {
    %c0_i32 = arith.constant 0 : i32
    %0 = arith.cmpi eq, %arg1, %c0_i32 : i32
    %1 = arith.extui %0 : i1 to i32
    %c0_i32_0 = arith.constant 0 : i32
    %2 = arith.cmpi ne, %1, %c0_i32_0 : i32
    scf.if %2 {
      %cst_4 = arith.constant 0.000000e+00 : f32
      %13 = vector.broadcast %cst_4 : f32 to vector<8x128xf32>
      %c0 = arith.constant 0 : index
      %c0_5 = arith.constant 0 : index
      %14 = vector.load %arg4[%c0, %c0_5] : memref<8x128xf32, #tpu.memory_space<vmem>>, vector<8x128xf32>
      tpu.vector_store %arg4[%c0, %c0_5], %13 {strides = array<i32>} : memref<8x128xf32, #tpu.memory_space<vmem>>, vector<8x128xf32>,
    } else {
    }
    %c1_i32 = arith.constant 1 : i32
    %3 = arith.muli %arg0, %c1_i32 : i32
    %4 = arith.addi %3, %arg1 : i32
    %c8_i32 = arith.constant 8 : i32
    %5 = arith.muli %4, %c8_i32 : i32
    %cst = arith.constant 0.000000e+00 : f32
    %6 = vector.broadcast %cst : f32 to vector<8x128xf32>
    %c0_i32_1 = arith.constant 0 : i32
    %7 = arith.cmpi slt, %4, %c0_i32_1 : i32
    %8 = arith.extui %7 : i1 to i32
    %c0_i32_2 = arith.constant 0 : i32
    %9 = arith.cmpi ne, %8, %c0_i32_2 : i32
    scf.if %9 {
      %c0 = arith.constant 0 : index
      %c0_4 = arith.constant 0 : index
      %13 = vector.load %arg4[%c0, %c0_4] : memref<8x128xf32, #tpu.memory_space<vmem>>, vector<8x128xf32>
      %c0_i32_5 = arith.constant 0 : i32
      %c8_i32_6 = arith.constant 8 : i32
      %14 = arith.muli %c0_i32_5, %c8_i32_6 : i32
      %15 = tpu.assume_multiple %14, 8 : i32
      %16 = arith.index_cast %15 : i32 to index
      %c0_7 = arith.constant 0 : index
      %17 = vector.load %arg2[%16, %c0_7] : memref<8x128xf32, #tpu.memory_space<vmem>>, vector<8x128xf32>
      %18 = arith.index_cast %15 : i32 to index
      %c0_8 = arith.constant 0 : index
      %19 = vector.load %arg3[%18, %c0_8] : memref<8x128xf32, #tpu.memory_space<vmem>>, vector<8x128xf32>
      %20 = arith.subf %19, %17 : vector<8x128xf32>
      %cst_9 = arith.constant 0.000000e+00 : f32
      %21 = vector.broadcast %cst_9 : f32 to vector<8x128xf32>
      %22 = arith.maximumf %20, %21 : vector<8x128xf32>
      %23 = math.absf %20 : vector<8x128xf32>
      %cst_10 = arith.constant 0.000000e+00 : f32
      %24 = vector.broadcast %cst_10 : f32 to vector<8x128xf32>
      %25 = arith.subf %24, %23 : vector<8x128xf32>
      %26 = math.exp %25 : vector<8x128xf32>
      %27 = math.log1p %26 : vector<8x128xf32>
      %28 = arith.addf %22, %27 : vector<8x128xf32>
      %29 = arith.addf %6, %28 : vector<8x128xf32>
      %c1_i32_11 = arith.constant 1 : i32
      %30 = arith.addf %13, %29 : vector<8x128xf32>
      %c0_12 = arith.constant 0 : index
      %c0_13 = arith.constant 0 : index
      %31 = vector.load %arg4[%c0_12, %c0_13] : memref<8x128xf32, #tpu.memory_space<vmem>>, vector<8x128xf32>
      tpu.vector_store %arg4[%c0_12, %c0_13], %30 {strides = array<i32>} : memref<8x128xf32, #tpu.memory_space<vmem>>, vector<8x128xf32>,
    } else {
    }
    %true = arith.constant true
    %10 = arith.xori %7, %true : i1
    %11 = arith.extui %10 : i1 to i32
    %c0_i32_3 = arith.constant 0 : i32
    %12 = arith.cmpi ne, %11, %c0_i32_3 : i32
    scf.if %12 {
      %c0 = arith.constant 0 : index
      %c0_4 = arith.constant 0 : index
      %13 = vector.load %arg4[%c0, %c0_4] : memref<8x128xf32, #tpu.memory_space<vmem>>, vector<8x128xf32>
      %c0_i32_5 = arith.constant 0 : i32
      %c8_i32_6 = arith.constant 8 : i32
      %14 = arith.muli %c0_i32_5, %c8_i32_6 : i32
      %15 = tpu.assume_multiple %14, 8 : i32
      %16 = arith.index_cast %15 : i32 to index
      %c0_7 = arith.constant 0 : index
      %17 = vector.load %arg2[%16, %c0_7] : memref<8x128xf32, #tpu.memory_space<vmem>>, vector<8x128xf32>
      %18 = arith.index_cast %15 : i32 to index
      %c0_8 = arith.constant 0 : index
      %19 = vector.load %arg3[%18, %c0_8] : memref<8x128xf32, #tpu.memory_space<vmem>>, vector<8x128xf32>
      %20 = arith.subf %19, %17 : vector<8x128xf32>
      %cst_9 = arith.constant 0.000000e+00 : f32
      %21 = vector.broadcast %cst_9 : f32 to vector<8x128xf32>
      %22 = arith.maximumf %20, %21 : vector<8x128xf32>
      %23 = math.absf %20 : vector<8x128xf32>
      %cst_10 = arith.constant 0.000000e+00 : f32
      %24 = vector.broadcast %cst_10 : f32 to vector<8x128xf32>
      %25 = arith.subf %24, %23 : vector<8x128xf32>
      %26 = math.exp %25 : vector<8x128xf32>
      %27 = math.log1p %26 : vector<8x128xf32>
      %28 = arith.addf %22, %27 : vector<8x128xf32>
      %29 = tpu.iota {dimensions = array<i32: 0>} : vector<8x128xi32>
      %30 = tpu.iota {dimensions = array<i32: 1>} : vector<8x128xi32>
      %31 = arith.addi %5, %15 : i32
      %32 = vector.broadcast %31 : i32 to vector<8x128xi32>
      %33 = arith.addi %32, %29 : vector<8x128xi32>
      %c128_i32 = arith.constant 128 : i32
      %34 = vector.broadcast %c128_i32 : i32 to vector<8x128xi32>
      %35 = arith.muli %33, %34 : vector<8x128xi32>
      %36 = arith.addi %35, %30 : vector<8x128xi32>
      %c8_i32_11 = arith.constant 8 : i32
      %37 = vector.broadcast %c8_i32_11 : i32 to vector<8x128xi32>
      %38 = arith.cmpi slt, %36, %37 : vector<8x128xi32>
      %cst_12 = arith.constant 0.000000e+00 : f32
      %39 = vector.broadcast %cst_12 : f32 to vector<8x128xf32>
      %40 = arith.select %38, %28, %39 : vector<8x128xi1>, vector<8x128xf32>
      %41 = arith.addf %6, %40 : vector<8x128xf32>
      %c1_i32_13 = arith.constant 1 : i32
      %42 = arith.addf %13, %41 : vector<8x128xf32>
      %c0_14 = arith.constant 0 : index
      %c0_15 = arith.constant 0 : index
      %43 = vector.load %arg4[%c0_14, %c0_15] : memref<8x128xf32, #tpu.memory_space<vmem>>, vector<8x128xf32>
      tpu.vector_store %arg4[%c0_14, %c0_15], %42 {strides = array<i32>} : memref<8x128xf32, #tpu.memory_space<vmem>>, vector<8x128xf32>,
    } else {
    }
    return
  }
  func.func @transform_0(%arg0: i32, %arg1: i32) -> (i32, i32) {
    %c1_i32 = arith.constant 1 : i32
    %0 = arith.muli %arg0, %c1_i32 : i32
    %1 = arith.addi %0, %arg1 : i32
    %c0_i32 = arith.constant 0 : i32
    %2 = arith.minsi %1, %c0_i32 : i32
    %c0_i32_0 = arith.constant 0 : i32
    %c0_i32_1 = arith.constant 0 : i32
    return %2, %c0_i32_0 : i32, i32
  }
  func.func @transform_1(%arg0: i32, %arg1: i32) -> (i32, i32) {
    %c1_i32 = arith.constant 1 : i32
    %0 = arith.muli %arg0, %c1_i32 : i32
    %1 = arith.addi %0, %arg1 : i32
    %c0_i32 = arith.constant 0 : i32
    %2 = arith.minsi %1, %c0_i32 : i32
    %c0_i32_0 = arith.constant 0 : i32
    %c0_i32_1 = arith.constant 0 : i32
    return %2, %c0_i32_0 : i32, i32
  }
  func.func @transform_2(%arg0: i32, %arg1: i32) -> (i32, i32) {
    %c0_i32 = arith.constant 0 : i32
    %c0_i32_0 = arith.constant 0 : i32
    return %arg0, %c0_i32 : i32, i32
  }
}

</mosaic_0001>

<llo_original>
// kernel: tpu_custom_call.1
$region0: #{tpu_custom_call.1}
  #allocation0 [shape = 'u32[]', space=smem, size = 0x4, offset = 0x4, fixed_abs, tag = 'smem constant byte address 0x4 - core index']
  #allocation1 [shape = 'u32[144,128]{1,0:T(1,128)}', space=vmem, size = 0x12000, scoped, tag = 'internal scratch']
  %s0 = inlined_call_operand.hbm [shape: f32[8,128], index: 0, kind: input, shape index: {}]
  %s1 = inlined_call_operand.hbm [shape: f32[8,128], index: 1, kind: input, shape index: {}]
  %s2 = inlined_call_operand.hbm [shape: f32[8,128], index: 2, kind: output, shape index: {}]
  %s3 = sld [smem:[#allocation0]]
  $region38: #{tpu_custom_call.1} parent=0
    _
  %s5 = ssub.s32 1, %s3
  %s6 = scalar_select 0, %s5, %s3
  $region1: #{tpu_custom_call.1} parent=0
    #allocation2 [shape = 'u8[4096]{0}', space=vmem, size = 0x1000, scoped, tag = 'input window, operand 0, single buffered']
    #allocation3 [shape = 's32[1]{0}', space=sflag, size = 0x4, scoped, tag = 'scoped memory for tpu_custom_call.1']
    #allocation4 [shape = 's32[1]{0}', space=sflag, size = 0x4, scoped, tag = 'scoped memory for tpu_custom_call.1']
    #allocation5 [shape = 'u8[4096]{0}', space=vmem, size = 0x1000, scoped, tag = 'input window, operand 1, single buffered']
    #allocation6 [shape = 's32[1]{0}', space=sflag, size = 0x4, scoped, tag = 'scoped memory for tpu_custom_call.1']
    #allocation7 [shape = 'u8[4096]{0}', space=vmem, size = 0x1000, scoped, tag = 'output window, operand 0, single buffered']
    %7 = vsyncpa [#allocation3], 0
    %8 = vsyncpa [#allocation6], 0
    %9 = vsyncpa [#allocation4], 0
    // Predicated region
    $region2: #{tpu_custom_call.1} parent=1 // pred_check
      _
    $region3: #{tpu_custom_call.1} parent=1 // pred_check_branch
      %11 = sbr.rel (0) target = $region5
    $region4: #{tpu_custom_call.1} parent=1 // pred_region
      %s12 = sadd.s32 0, 0
      %p13 = scmp.lt.s32.totalorder %s12, 0
      %s14 = scalar_select %p13, %s12, 0
      %s16 = ssub.s32 128, 128
      %17 = vsyncadd [#allocation3], %s16
      %s18 = smul.addr %s14, 128
      %s19 = scalar_lea.hbm %s0, %s18
      %s21 = sshll.u32 [#allocation2], 4
      %s22 = int_to_ptr.vmem [resolvable:$true] %s21
      %24 = dma.hbm_to_vmem [thread:$0]  %s19, 128, %s22, [#allocation3]
    $region5: #{tpu_custom_call.1} parent=1 // pred_fallthru
      _
    // Predicated region
    $region6: #{tpu_custom_call.1} parent=1 // pred_check
      _
    $region7: #{tpu_custom_call.1} parent=1 // pred_check_branch
      %26 = sbr.rel (0) target = $region9
    $region8: #{tpu_custom_call.1} parent=1 // pred_region
      %s27 = sadd.s32 0, 0
      %p28 = scmp.lt.s32.totalorder %s27, 0
      %s29 = scalar_select %p28, %s27, 0
      %s31 = ssub.s32 128, 128
      %32 = vsyncadd [#allocation6], %s31
      %s33 = smul.addr %s29, 128
      %s34 = scalar_lea.hbm %s1, %s33
      %s36 = sshll.u32 [#allocation5], 4
      %s37 = int_to_ptr.vmem [resolvable:$true] %s36
      %39 = dma.hbm_to_vmem [thread:$0]  %s34, 128, %s37, [#allocation6]
    $region9: #{tpu_custom_call.1} parent=1 // pred_fallthru
      _
    // Predicated region
    $region10: #{tpu_custom_call.1} parent=1 // pred_check
      _
    $region11: #{tpu_custom_call.1} parent=1 // pred_check_branch
      %41 = sbr.rel (0) target = $region13
    $region12: #{tpu_custom_call.1} parent=1 // pred_region
      %42 = dma.done [#allocation3], 128
    $region13: #{tpu_custom_call.1} parent=1 // pred_fallthru
      _
    // Predicated region
    $region14: #{tpu_custom_call.1} parent=1 // pred_check
      _
    $region15: #{tpu_custom_call.1} parent=1 // pred_check_branch
      %44 = sbr.rel (0) target = $region17
    $region16: #{tpu_custom_call.1} parent=1 // pred_region
      %45 = dma.done [#allocation6], 128
    $region17: #{tpu_custom_call.1} parent=1 // pred_fallthru
      _
    %s46 = sadd.s32 0, 0
    %p47 = scmp.lt.s32.totalorder %s46, 0
    %s48 = scalar_select %p47, %s46, 0
    %s49 = sadd.s32 0, 0
    %p50 = scmp.lt.s32.totalorder %s49, 0
    %s51 = scalar_select %p50, %s49, 0
    %p52 = scmp.eq.s32.totalorder 0, 0
    // Predicated region
    $region18: #{tpu_custom_call.1} parent=1 // pred_check
      %p53 = pneg %p52
    $region19: #{tpu_custom_call.1} parent=1 // pred_check_branch
      %55 = sbr.rel (%p53) target = $region21
    $region20: #{tpu_custom_call.1} parent=1 // pred_region
      %56 = vst [vmem:[#allocation7] sm:$0xff] 0.0
    $region21: #{tpu_custom_call.1} parent=1 // pred_fallthru
      _
    %s57 = sadd.s32 0, 0
    %s58 = smul.u32 %s57, 8
    %p59 = scmp.lt.s32.totalorder %s57, 0
    // Predicated region
    $region22: #{tpu_custom_call.1} parent=1 // pred_check
      %p60 = pneg %p59
    $region23: #{tpu_custom_call.1} parent=1 // pred_check_branch
      %62 = sbr.rel (%p60) target = $region25
    $region24: #{tpu_custom_call.1} parent=1 // pred_region
      %v63 = vld [vmem:[#allocation7] sm:$0xff]
      %v64 = vld [vmem:[#allocation2] sm:$0xff]
      %v65 = vld [vmem:[#allocation5] sm:$0xff]
      %v66 = vsub.f32 %v65, %v64
      %v67 = vmax.f32 %v66, 0.0
      %v68 = vand.u32 2147483647, %v66
      %v69 = vsub.f32 0.0, %v68
      %v70 = vmul.f32 %v69, 1.442695
      %v71 = vpow.pop %v70
      %v72 = vadd.f32 %v71, 1.0
      %v73 = vlog2.pop %v72
      %v74 = vmul.f32 %v73, 0.6931472
      %v75 = vmul.f32 -0.5, %v71
      %v76 = vadd.f32 %v75, 1.0
      %v77 = vmul.f32 %v76, %v71
      %v78 = vand.u32 2147483647, %v71
      %vm79 = vcmp.lt.f32.partialorder %v78, 0.0004427343
      %v80 = vsel %vm79, %v77, %v74
      %v81 = vadd.f32 %v67, %v80
      %v82 = vadd.f32 %v81, 0.0
      %v83 = vadd.f32 %v63, %v82
      %84 = vst [vmem:[#allocation7] sm:$0xff] %v83
    $region25: #{tpu_custom_call.1} parent=1 // pred_fallthru
      _
    %p85 = scmp.ge.s32.totalorder %s57, 0
    // Predicated region
    $region26: #{tpu_custom_call.1} parent=1 // pred_check
      %p86 = pneg %p85
    $region27: #{tpu_custom_call.1} parent=1 // pred_check_branch
      %88 = sbr.rel (%p86) target = $region29
    $region28: #{tpu_custom_call.1} parent=1 // pred_region
      %v89 = vld [vmem:[#allocation7] sm:$0xff]
      %v90 = vld [vmem:[#allocation2] sm:$0xff]
      %v91 = vld [vmem:[#allocation5] sm:$0xff]
      %v92 = vsub.f32 %v91, %v90
      %v93 = vmax.f32 %v92, 0.0
      %v94 = vand.u32 2147483647, %v92
      %v95 = vsub.f32 0.0, %v94
      %v96 = vmul.f32 %v95, 1.442695
      %v97 = vpow.pop %v96
      %v98 = vadd.f32 %v97, 1.0
      %v99 = vlog2.pop %v98
      %v100 = vmul.f32 %v99, 0.6931472
      %v101 = vmul.f32 -0.5, %v97
      %v102 = vadd.f32 %v101, 1.0
      %v103 = vmul.f32 %v102, %v97
      %v104 = vand.u32 2147483647, %v97
      %vm105 = vcmp.lt.f32.partialorder %v104, 0.0004427343
      %v106 = vsel %vm105, %v103, %v100
      %v107 = vadd.f32 %v93, %v106
      %v108 = vlaneseq
      %v109 = vshrl.u32 %v108, 7
      %v110 = vlaneseq
      %v111 = vand.u32 %v110, 127
      %s112 = sadd.s32 %s58, 0
      %v113 = vstv %s112
      %v114 = vadd.s32 %v113, %v109
      %v115 = vmul.u32 %v114, 128
      %v116 = vadd.s32 %v115, %v111
      %vm117 = vcmp.lt.s32.totalorder %v116, 8
      %v118 = vsel %vm117, %v107, 0.0
      %v119 = vadd.f32 %v118, 0.0
      %v120 = vadd.f32 %v89, %v119
      %121 = vst [vmem:[#allocation7] sm:$0xff] %v120
    $region29: #{tpu_custom_call.1} parent=1 // pred_fallthru
      _
    // Predicated region
    $region30: #{tpu_custom_call.1} parent=1 // pred_check
      _
    $region31: #{tpu_custom_call.1} parent=1 // pred_check_branch
      %123 = sbr.rel (0) target = $region33
    $region32: #{tpu_custom_call.1} parent=1 // pred_region
      %s125 = ssub.s32 128, 128
      %126 = vsyncadd [#allocation4], %s125
      %s128 = sshll.u32 [#allocation7], 4
      %s129 = int_to_ptr.vmem [resolvable:$true] %s128
      %131 = dma.vmem_to_hbm [thread:$0]  %s129, 128, %s2, [#allocation4]
    $region33: #{tpu_custom_call.1} parent=1 // pred_fallthru
      _
    // Predicated region
    $region34: #{tpu_custom_call.1} parent=1 // pred_check
      _
    $region35: #{tpu_custom_call.1} parent=1 // pred_check_branch
      %133 = sbr.rel (0) target = $region37
    $region36: #{tpu_custom_call.1} parent=1 // pred_region
      %134 = dma.done [#allocation4], 128
    $region37: #{tpu_custom_call.1} parent=1 // pred_fallthru
      _
    %135 = vsyncpa [#allocation3], 1
    %136 = vsyncpa [#allocation6], 1
    %137 = vsyncpa [#allocation4], 1

</llo_original>
